<compile_context>
chip_gen: v5e
topology: v5e:2x2
jax: 0.10.0
libtpu: 0.0.40
codegen_flags: <defaults>
</compile_context>

<pallas_src>
import math

import jax
import jax.numpy as jnp
from jax.experimental import pallas as pl
from jax.experimental.pallas import tpu as pltpu

# Small, module-consistent shapes (reference defaults are num_class=45, dim=512).
NUM_CLASS = 16   # num_class
DIM_FF = 128     # dim_feedforward / hidden_dim
BATCH = 2        # batch size


def groupwise_linear_kernel(x_ref, w_ref, b_ref, out_ref):
    """out[k, b] = sum_d W[k, d] * x[k, b, d] + b[k].

    x_ref:   (K, TB, D) VMEM   -- transformer output tile, native KBD layout
    w_ref:   (K, D)     VMEM   -- GroupWiseLinear weight (resident)
    b_ref:   (K, 1)     VMEM   -- bias as a column (resident)
    out_ref: (K, TB)    VMEM   -- logits with batch on the lane axis
    """
    x = x_ref[...]                               # (K, TB, D)
    w = w_ref[...]                               # (K, D)
    # VPU multiply + XLU lane-reduce over D (deliberately kept off the MXU).
    s = jnp.sum(x * w[:, None, :], axis=-1)      # (K, TB)
    out_ref[...] = s + b_ref[...]                # bias broadcast over batch lanes


def _pick_batch_tile(batch):
    """Lane-dense batch tile (multiple of 128) when possible, else full batch.

    Tiles are kept modest so 2 inputs x 2 pipeline buffers fit comfortably in
    v7x's 64 MiB VMEM as well as v5e/v6e's 128 MiB.
    """
    if batch % 128 == 0:
        for tb in (512, 256, 128):
            if batch % tb == 0:
                return tb
    return batch


def groupwise_linear(hs_kbd, W, b_col, *, tb=None):
    """GroupWiseLinear over hs in (K, B, D) layout; returns logits as (K, B)."""
    K, B, D = hs_kbd.shape
    if tb is None:
        tb = _pick_batch_tile(B)
    grid = (B // tb,)
    return pl.pallas_call(
        groupwise_linear_kernel,
        out_shape=jax.ShapeDtypeStruct((K, B), jnp.float32),
        grid=grid,
        in_specs=[
            pl.BlockSpec((K, tb, D), lambda i: (0, i, 0)),  # stream batch tiles
            pl.BlockSpec((K, D), lambda i: (0, 0)),          # W pinned in VMEM
            pl.BlockSpec((K, 1), lambda i: (0, 0)),          # bias pinned in VMEM
        ],
        out_specs=pl.BlockSpec((K, tb), lambda i: (0, i)),
        compiler_params=pltpu.CompilerParams(
            dimension_semantics=("parallel",)),               # shard batch across TCs
    )(hs_kbd, W, b_col)


def init_params(key, num_class=NUM_CLASS, hidden_dim=DIM_FF):
    """Deterministic synthetic init, mirroring the PyTorch __init__ shapes."""
    kw, kb, kq = jax.random.split(key, 3)
    stdv = 1.0 / math.sqrt(hidden_dim)
    # GroupWiseLinear.W: (1, num_class, hidden_dim) ~ U(-stdv, stdv); stored (K, D)
    W = jax.random.uniform(kw, (num_class, hidden_dim), jnp.float32, -stdv, stdv)
    # GroupWiseLinear.b: (1, num_class) ~ U(-stdv, stdv)
    b = jax.random.uniform(kb, (1, num_class), jnp.float32, -stdv, stdv)
    # query_embed: (num_class, dim_feedforward), xavier_uniform (kept for parity;
    # it only feeds the undefined q2l_transformer, so it is unused downstream).
    limit = math.sqrt(6.0 / (num_class + hidden_dim))
    query_embed = jax.random.uniform(
        kq, (num_class, hidden_dim), jnp.float32, -limit, limit)
    return W, b, query_embed


def predictor_forward(hs_kbd, W, b):
    """Predictor.forward tail: out = fc_decoder(einsum('KBD->BKD', hs)); returns (hs, out).

    # TODO(synk): seq_pre_model, ppi_feature_pre_model and q2l_transformer are
    # external/undefined modules in the reference source, so the transformer
    # output `hs` (K, B, D) is taken as the kernel input here.
    """
    out_kb = groupwise_linear(hs_kbd, W, b.reshape(-1, 1))   # (K, B) logits
    # Only the tiny (K, B) logits matrix is transposed to (B, K) here, instead
    # of transposing the full (K, B, D) activation outside the kernel.
    out = out_kb.T
    return hs_kbd, out


if __name__ == "__main__":
    key = jax.random.PRNGKey(0)
    k_hs, k_params = jax.random.split(key)

    # Synthetic transformer output hs: (K, B, D)
    hs = jax.random.normal(k_hs, (NUM_CLASS, BATCH, DIM_FF), jnp.float32)
    W, b, _query_embed = init_params(k_params)

    hs_out, out = predictor_forward(hs, W, b)
    out = jax.block_until_ready(out)
    hs_out = jax.block_until_ready(hs_out)

    # Pure-JAX reference for correctness.
    x_ref = jnp.einsum('KBD->BKD', hs)
    ref = jnp.sum(W[None, :, :] * x_ref, axis=-1) + b
    assert out.shape == (BATCH, NUM_CLASS)
    assert jnp.allclose(out, ref, atol=1e-5, rtol=1e-5)

    print("KERNEL_OK")
</pallas_src>

<mosaic_0001>
module attributes {stable_mosaic.version = 11 : i64} {
  func.func @groupwise_linear_kernel(%arg0: i32, %arg1: memref<16x2x128xf32, #tpu.memory_space<vmem>>, %arg2: memref<16x128xf32, #tpu.memory_space<vmem>>, %arg3: memref<16x1xf32, #tpu.memory_space<vmem>>, %arg4: memref<16x2xf32, #tpu.memory_space<vmem>>) attributes {dimension_semantics = [#tpu.dimension_semantics<parallel>], iteration_bounds = array<i64: 1>, scalar_prefetch = 0 : i64, scratch_operands = 0 : i64, tpu.core_type = #tpu.core_type<tc>, window_params = [{transform_indices = @transform_0, window_bounds = array<i64: 16, 2, 128>}, {pipeline_mode = #tpu.pipeline_mode<synchronous>, transform_indices = @transform_1, window_bounds = array<i64: 16, 128>}, {pipeline_mode = #tpu.pipeline_mode<synchronous>, transform_indices = @transform_2, window_bounds = array<i64: 16, 1>}, {transform_indices = @transform_3, window_bounds = array<i64: 16, 2>}]} {
    %c0 = arith.constant 0 : index
    %c0_0 = arith.constant 0 : index
    %c0_1 = arith.constant 0 : index
    %0 = vector.load %arg1[%c0, %c0_0, %c0_1] : memref<16x2x128xf32, #tpu.memory_space<vmem>>, vector<16x2x128xf32>
    %c0_2 = arith.constant 0 : index
    %c0_3 = arith.constant 0 : index
    %1 = vector.load %arg2[%c0_2, %c0_3] : memref<16x128xf32, #tpu.memory_space<vmem>>, vector<16x128xf32>
    %2 = vector.shape_cast %1 : vector<16x128xf32> to vector<16x1x128xf32>
    %3 = vector.broadcast %2 : vector<16x1x128xf32> to vector<16x2x128xf32>
    %4 = arith.mulf %0, %3 : vector<16x2x128xf32>
    %cst = arith.constant dense<0.000000e+00> : vector<16x2xf32>
    %5 = vector.multi_reduction <add>, %4, %cst [2] : vector<16x2x128xf32> to vector<16x2xf32>
    %c0_4 = arith.constant 0 : index
    %c0_5 = arith.constant 0 : index
    %6 = vector.load %arg3[%c0_4, %c0_5] : memref<16x1xf32, #tpu.memory_space<vmem>>, vector<16x1xf32>
    %7 = vector.broadcast %6 : vector<16x1xf32> to vector<16x2xf32>
    %8 = arith.addf %5, %7 : vector<16x2xf32>
    %c0_6 = arith.constant 0 : index
    %c0_7 = arith.constant 0 : index
    %9 = vector.load %arg4[%c0_6, %c0_7] : memref<16x2xf32, #tpu.memory_space<vmem>>, vector<16x2xf32>
    tpu.vector_store %arg4[%c0_6, %c0_7], %8 {strides = array<i32>} : memref<16x2xf32, #tpu.memory_space<vmem>>, vector<16x2xf32>,
    return
  }
  func.func @transform_0(%arg0: i32) -> (i32, i32, i32) {
    %c0_i32 = arith.constant 0 : i32
    %c0_i32_0 = arith.constant 0 : i32
    %c0_i32_1 = arith.constant 0 : i32
    return %c0_i32, %arg0, %c0_i32_0 : i32, i32, i32
  }
  func.func @transform_1(%arg0: i32) -> (i32, i32) {
    %c0_i32 = arith.constant 0 : i32
    %c0_i32_0 = arith.constant 0 : i32
    %c0_i32_1 = arith.constant 0 : i32
    return %c0_i32, %c0_i32_0 : i32, i32
  }
  func.func @transform_2(%arg0: i32) -> (i32, i32) {
    %c0_i32 = arith.constant 0 : i32
    %c0_i32_0 = arith.constant 0 : i32
    %c0_i32_1 = arith.constant 0 : i32
    return %c0_i32, %c0_i32_0 : i32, i32
  }
  func.func @transform_3(%arg0: i32) -> (i32, i32) {
    %c0_i32 = arith.constant 0 : i32
    %c0_i32_0 = arith.constant 0 : i32
    return %c0_i32, %arg0 : i32, i32
  }
}

</mosaic_0001>

<llo_original>
// kernel: tpu_custom_call.1
$region0: #{tpu_custom_call.1}
  #allocation0 [shape = 'u32[]', space=smem, size = 0x4, offset = 0x4, fixed_abs, tag = 'smem constant byte address 0x4 - core index']
  #allocation1 [shape = 'u32[72,128]{1,0:T(1,128)}', space=vmem, size = 0x9000, scoped, tag = 'internal scratch']
  %s0 = inlined_call_operand.hbm [shape: f32[16,2,128], index: 0, kind: input, shape index: {}]
  %s1 = inlined_call_operand.vmem [shape: f32[16,128], index: 1, kind: input, shape index: {}]
  %s2 = inlined_call_operand.vmem [shape: f32[16,1], index: 2, kind: input, shape index: {}]
  %s3 = inlined_call_operand.vmem [shape: f32[16,2], index: 3, kind: output, shape index: {}]
  %s4 = sld [smem:[#allocation0]]
  $region26: #{tpu_custom_call.1} parent=0
    _
  %s6 = ssub.s32 1, %s4
  %s7 = scalar_select 0, %s6, %s4
  $region1: #{tpu_custom_call.1} parent=0
    #allocation2 [shape = 'u8[16384]{0}', space=vmem, size = 0x4000, scoped, tag = 'input window, operand 0, single buffered']
    #allocation3 [shape = 's32[1]{0}', space=sflag, size = 0x4, scoped, tag = 'scoped memory for tpu_custom_call.1']
    %8 = vsyncpa [#allocation3], 0
    // Predicated region
    $region2: #{tpu_custom_call.1} parent=1 // pred_check
      _
    $region3: #{tpu_custom_call.1} parent=1 // pred_check_branch
      %10 = sbr.rel (0) target = $region5
    $region4: #{tpu_custom_call.1} parent=1 // pred_region
      %12 = vsyncadd [#allocation3], 0
      %s13 = sshll.u32 %s0, 4
      %s14 = int_to_ptr.hbm [resolvable:$true] %s13
      %s15 = sshll.u32 [#allocation2], 4
      %s16 = int_to_ptr.vmem [resolvable:$true] %s15
      %21 = dma.hbm_to_vmem [thread:$0]  %s14, 512, %s16, [#allocation3], 32, 32, 2
    $region5: #{tpu_custom_call.1} parent=1 // pred_fallthru
      _
    // Predicated region
    $region6: #{tpu_custom_call.1} parent=1 // pred_check
      _
    $region7: #{tpu_custom_call.1} parent=1 // pred_check_branch
      %23 = sbr.rel (0) target = $region9
    $region8: #{tpu_custom_call.1} parent=1 // pred_region
      _
    $region9: #{tpu_custom_call.1} parent=1 // pred_fallthru
      _
    // Predicated region
    $region10: #{tpu_custom_call.1} parent=1 // pred_check
      _
    $region11: #{tpu_custom_call.1} parent=1 // pred_check_branch
      %25 = sbr.rel (0) target = $region13
    $region12: #{tpu_custom_call.1} parent=1 // pred_region
      _
    $region13: #{tpu_custom_call.1} parent=1 // pred_fallthru
      _
    // Predicated region
    $region14: #{tpu_custom_call.1} parent=1 // pred_check
      _
    $region15: #{tpu_custom_call.1} parent=1 // pred_check_branch
      %27 = sbr.rel (0) target = $region17
    $region16: #{tpu_custom_call.1} parent=1 // pred_region
      %29 = dma.done [#allocation3], 512
    $region17: #{tpu_custom_call.1} parent=1 // pred_fallthru
      _
    %v30 = vld [vmem:[#allocation2] sm:$0x3]
    %v31 = vld [vmem:[#allocation2 + $0x2] sm:$0x3]
    %v32 = vld [vmem:[#allocation2 + $0x4] sm:$0x3]
    %v33 = vld [vmem:[#allocation2 + $0x6] sm:$0x3]
    %v34 = vld [vmem:[#allocation2 + $0x8] sm:$0x3]
    %v35 = vld [vmem:[#allocation2 + $0xa] sm:$0x3]
    %v36 = vld [vmem:[#allocation2 + $0xc] sm:$0x3]
    %v37 = vld [vmem:[#allocation2 + $0xe] sm:$0x3]
    %v38 = vld [vmem:[#allocation2 + $0x10] sm:$0x3]
    %v39 = vld [vmem:[#allocation2 + $0x12] sm:$0x3]
    %v40 = vld [vmem:[#allocation2 + $0x14] sm:$0x3]
    %v41 = vld [vmem:[#allocation2 + $0x16] sm:$0x3]
    %v42 = vld [vmem:[#allocation2 + $0x18] sm:$0x3]
    %v43 = vld [vmem:[#allocation2 + $0x1a] sm:$0x3]
    %v44 = vld [vmem:[#allocation2 + $0x1c] sm:$0x3]
    %v45 = vld [vmem:[#allocation2 + $0x1e] sm:$0x3]
    %v46 = vld [vmem:[%s1] sm:$0xff]
    %v47 = vld [vmem:[%s1 + $0x8] sm:$0xff]
    %v50 = vrot.slane %v46, 1
    %v51 = vrot.slane %v46, 2
    %v52 = vrot.slane %v46, 3
    %v53 = vrot.slane %v46, 4
    %v54 = vrot.slane %v46, 5
    %v55 = vrot.slane %v46, 6
    %v56 = vrot.slane %v46, 7
    %v57 = vrot.slane %v47, 1
    %v58 = vrot.slane %v47, 2
    %v59 = vrot.slane %v47, 3
    %v60 = vrot.slane %v47, 4
    %v61 = vrot.slane %v47, 5
    %v62 = vrot.slane %v47, 6
    %v63 = vrot.slane %v47, 7
    %v64 = vperm.slane %v46, 0
    %v65 = vperm.slane %v50, 0
    %v66 = vperm.slane %v51, 0
    %v67 = vperm.slane %v52, 0
    %v68 = vperm.slane %v53, 0
    %v69 = vperm.slane %v54, 0
    %v70 = vperm.slane %v55, 0
    %v71 = vperm.slane %v56, 0
    %v72 = vperm.slane %v47, 0
    %v73 = vperm.slane %v57, 0
    %v74 = vperm.slane %v58, 0
    %v75 = vperm.slane %v59, 0
    %v76 = vperm.slane %v60, 0
    %v77 = vperm.slane %v61, 0
    %v78 = vperm.slane %v62, 0
    %v79 = vperm.slane %v63, 0
    %v96 = vmul.f32 %v30, %v64
    %v97 = vmul.f32 %v31, %v65
    %v98 = vmul.f32 %v32, %v66
    %v99 = vmul.f32 %v33, %v67
    %v100 = vmul.f32 %v34, %v68
    %v101 = vmul.f32 %v35, %v69
    %v102 = vmul.f32 %v36, %v70
    %v103 = vmul.f32 %v37, %v71
    %v104 = vmul.f32 %v38, %v72
    %v105 = vmul.f32 %v39, %v73
    %v106 = vmul.f32 %v40, %v74
    %v107 = vmul.f32 %v41, %v75
    %v108 = vmul.f32 %v42, %v76
    %v109 = vmul.f32 %v43, %v77
    %v110 = vmul.f32 %v44, %v78
    %v111 = vmul.f32 %v45, %v79
    %vm112 = vcmask 1041408
    %v113 = vsel %vm112, %v96, 0.0
    %114 = vadd.xlane.f32.xlu0 %v113
    %v115 = vpop.xlane.xlu0 %114
    %v116 = vsel %vm112, %v97, 0.0
    %117 = vadd.xlane.f32.xlu0 %v116
    %v118 = vpop.xlane.xlu0 %117
    %v119 = vsel %vm112, %v98, 0.0
    %120 = vadd.xlane.f32.xlu0 %v119
    %v121 = vpop.xlane.xlu0 %120
    %v122 = vsel %vm112, %v99, 0.0
    %123 = vadd.xlane.f32.xlu0 %v122
    %v124 = vpop.xlane.xlu0 %123
    %v125 = vsel %vm112, %v100, 0.0
    %126 = vadd.xlane.f32.xlu0 %v125
    %v127 = vpop.xlane.xlu0 %126
    %v128 = vsel %vm112, %v101, 0.0
    %129 = vadd.xlane.f32.xlu0 %v128
    %v130 = vpop.xlane.xlu0 %129
    %v131 = vsel %vm112, %v102, 0.0
    %132 = vadd.xlane.f32.xlu0 %v131
    %v133 = vpop.xlane.xlu0 %132
    %v134 = vsel %vm112, %v103, 0.0
    %135 = vadd.xlane.f32.xlu0 %v134
    %v136 = vpop.xlane.xlu0 %135
    %v137 = vsel %vm112, %v104, 0.0
    %138 = vadd.xlane.f32.xlu0 %v137
    %v139 = vpop.xlane.xlu0 %138
    %v140 = vsel %vm112, %v105, 0.0
    %141 = vadd.xlane.f32.xlu0 %v140
    %v142 = vpop.xlane.xlu0 %141
    %v143 = vsel %vm112, %v106, 0.0
    %144 = vadd.xlane.f32.xlu0 %v143
    %v145 = vpop.xlane.xlu0 %144
    %v146 = vsel %vm112, %v107, 0.0
    %147 = vadd.xlane.f32.xlu0 %v146
    %v148 = vpop.xlane.xlu0 %147
    %v149 = vsel %vm112, %v108, 0.0
    %150 = vadd.xlane.f32.xlu0 %v149
    %v151 = vpop.xlane.xlu0 %150
    %v152 = vsel %vm112, %v109, 0.0
    %153 = vadd.xlane.f32.xlu0 %v152
    %v154 = vpop.xlane.xlu0 %153
    %v155 = vsel %vm112, %v110, 0.0
    %156 = vadd.xlane.f32.xlu0 %v155
    %v157 = vpop.xlane.xlu0 %156
    %v158 = vsel %vm112, %v111, 0.0
    %159 = vadd.xlane.f32.xlu0 %v158
    %v160 = vpop.xlane.xlu0 %159
    %v161 = vld [vmem:[%s2] sm:$0xff]
    %v162 = vld [vmem:[%s2 + $0x8] sm:$0xff]
    %164 = vset.pattern.permute.xlu0 0
    %165 = vperm.xlu0 %164, %v161
    %v166 = vpop.permute.xlu0 %165
    %168 = vset.pattern.permute.xlu0 0
    %169 = vperm.xlu0 %168, %v162
    %v170 = vpop.permute.xlu0 %169
    %v171 = vperm.slane %v166, 0
    %v172 = vperm.slane %v166, 1
    %v173 = vperm.slane %v166, 2
    %v174 = vperm.slane %v166, 3
    %v175 = vperm.slane %v166, 4
    %v176 = vperm.slane %v166, 5
    %v177 = vperm.slane %v166, 6
    %v178 = vperm.slane %v166, 7
    %v179 = vperm.slane %v170, 0
    %v180 = vperm.slane %v170, 1
    %v181 = vperm.slane %v170, 2
    %v182 = vperm.slane %v170, 3
    %v183 = vperm.slane %v170, 4
    %v184 = vperm.slane %v170, 5
    %v185 = vperm.slane %v170, 6
    %v186 = vperm.slane %v170, 7
    %v203 = vadd.f32 %v115, %v171
    %v204 = vadd.f32 %v118, %v172
    %v205 = vadd.f32 %v121, %v173
    %v206 = vadd.f32 %v124, %v174
    %v207 = vadd.f32 %v127, %v175
    %v208 = vadd.f32 %v130, %v176
    %v209 = vadd.f32 %v133, %v177
    %v210 = vadd.f32 %v136, %v178
    %v211 = vadd.f32 %v139, %v179
    %v212 = vadd.f32 %v142, %v180
    %v213 = vadd.f32 %v145, %v181
    %v214 = vadd.f32 %v148, %v182
    %v215 = vadd.f32 %v151, %v183
    %v216 = vadd.f32 %v154, %v184
    %v217 = vadd.f32 %v157, %v185
    %v218 = vadd.f32 %v160, %v186
    %235 = vset.pattern.permute.xlu0 0
    %236 = vperm.xlu0 %235, %v203
    %v237 = vpop.permute.xlu0 %236
    %238 = vset.pattern.permute.xlu0 0
    %239 = vperm.xlu0 %238, %v204
    %v240 = vpop.permute.xlu0 %239
    %241 = vset.pattern.permute.xlu0 0
    %242 = vperm.xlu0 %241, %v205
    %v243 = vpop.permute.xlu0 %242
    %244 = vset.pattern.permute.xlu0 0
    %245 = vperm.xlu0 %244, %v206
    %v246 = vpop.permute.xlu0 %245
    %247 = vset.pattern.permute.xlu0 0
    %248 = vperm.xlu0 %247, %v207
    %v249 = vpop.permute.xlu0 %248
    %250 = vset.pattern.permute.xlu0 0
    %251 = vperm.xlu0 %250, %v208
    %v252 = vpop.permute.xlu0 %251
    %253 = vset.pattern.permute.xlu0 0
    %254 = vperm.xlu0 %253, %v209
    %v255 = vpop.permute.xlu0 %254
    %256 = vset.pattern.permute.xlu0 0
    %257 = vperm.xlu0 %256, %v210
    %v258 = vpop.permute.xlu0 %257
    %259 = vset.pattern.permute.xlu0 0
    %260 = vperm.xlu0 %259, %v211
    %v261 = vpop.permute.xlu0 %260
    %262 = vset.pattern.permute.xlu0 0
    %263 = vperm.xlu0 %262, %v212
    %v264 = vpop.permute.xlu0 %263
    %265 = vset.pattern.permute.xlu0 0
    %266 = vperm.xlu0 %265, %v213
    %v267 = vpop.permute.xlu0 %266
    %268 = vset.pattern.permute.xlu0 0
    %269 = vperm.xlu0 %268, %v214
    %v270 = vpop.permute.xlu0 %269
    %271 = vset.pattern.permute.xlu0 0
    %272 = vperm.xlu0 %271, %v215
    %v273 = vpop.permute.xlu0 %272
    %274 = vset.pattern.permute.xlu0 0
    %275 = vperm.xlu0 %274, %v216
    %v276 = vpop.permute.xlu0 %275
    %277 = vset.pattern.permute.xlu0 0
    %278 = vperm.xlu0 %277, %v217
    %v279 = vpop.permute.xlu0 %278
    %280 = vset.pattern.permute.xlu0 0
    %281 = vperm.xlu0 %280, %v218
    %v282 = vpop.permute.xlu0 %281
    %v283 = vlaneseq
    %v284 = vand.u32 %v283, 127
    %v285 = vperm.slane %v237, %v284
    %v286 = vperm.slane %v240, %v284
    %v287 = vperm.slane %v243, %v284
    %v288 = vperm.slane %v246, %v284
    %v289 = vperm.slane %v249, %v284
    %v290 = vperm.slane %v252, %v284
    %v291 = vperm.slane %v255, %v284
    %v292 = vperm.slane %v258, %v284
    %v293 = vperm.slane %v261, %v284
    %v294 = vperm.slane %v264, %v284
    %v295 = vperm.slane %v267, %v284
    %v296 = vperm.slane %v270, %v284
    %v297 = vperm.slane %v273, %v284
    %v298 = vperm.slane %v276, %v284
    %v299 = vperm.slane %v279, %v284
    %v300 = vperm.slane %v282, %v284
    %vm301 = vcmask 1041409
    %v302 = vsel %vm301, %v286, %v285
    %vm303 = vcmask 1042434
    %v304 = vsel %vm303, %v287, %v302
    %vm305 = vcmask 1043459
    %v306 = vsel %vm305, %v288, %v304
    %vm307 = vcmask 1044484
    %v308 = vsel %vm307, %v289, %v306
    %vm309 = vcmask 1045509
    %v310 = vsel %vm309, %v290, %v308
    %vm311 = vcmask 1046534
    %v312 = vsel %vm311, %v291, %v310
    %vm313 = vcmask 1047559
    %v314 = vsel %vm313, %v292, %v312
    %v315 = vsel %vm301, %v294, %v293
    %v316 = vsel %vm303, %v295, %v315
    %v317 = vsel %vm305, %v296, %v316
    %v318 = vsel %vm307, %v297, %v317
    %v319 = vsel %vm309, %v298, %v318
    %v320 = vsel %vm311, %v299, %v319
    %v321 = vsel %vm313, %v300, %v320
    %vm324 = vcmask 15360
    %325 = vst.msk [vmem:[%s3] sm:$0xff] %vm324, %v314
    %326 = vst.msk [vmem:[%s3 + $0x8] sm:$0xff] %vm324, %v321
    // Predicated region
    $region18: #{tpu_custom_call.1} parent=1 // pred_check
      _
    $region19: #{tpu_custom_call.1} parent=1 // pred_check_branch
      %328 = sbr.rel (0) target = $region21
    $region20: #{tpu_custom_call.1} parent=1 // pred_region
      _
    $region21: #{tpu_custom_call.1} parent=1 // pred_fallthru
      _
    // Predicated region
    $region22: #{tpu_custom_call.1} parent=1 // pred_check
      _
    $region23: #{tpu_custom_call.1} parent=1 // pred_check_branch
      %330 = sbr.rel (0) target = $region25
    $region24: #{tpu_custom_call.1} parent=1 // pred_region
      _
    $region25: #{tpu_custom_call.1} parent=1 // pred_fallthru
      _
    %331 = vsyncpa [#allocation3], 1

</llo_original>
